<compile_context>
chip_gen: v5e
topology: v5e:2x2
jax: 0.10.0
libtpu: 0.0.40
codegen_flags: <defaults>
</compile_context>

<pallas_src>
import functools

import numpy as np
import jax
import jax.numpy as jnp
from jax import lax
from jax.experimental import pallas as pl
from jax.experimental.pallas import tpu as pltpu


# Finite "-inf" as a *Python float* so it inlines as a literal instead of being
# captured as a traced constant (the previous jnp.float32(...) broke tracing).
_NEG = -1.0e30


def _rnnt_loss_kernel(blank_idx,
                      loglen_sref, tgtlen_sref,   # scalar prefetch (SMEM, (B,)) int32
                      tgt_ref,                    # VMEM (1, U1, 1) int32
                      logits_ref,                 # VMEM (1, T, U1, C) input dtype
                      cost_ref,                   # VMEM (1, 1, 1) f32
                      alpha_ref):                 # VMEM scratch (U1, T) f32
    b = pl.program_id(0)
    _, T, U1, C = logits_ref.shape

    # ---- 1. blank / target log-probs without a full log_softmax lattice ----
    xf = logits_ref[0].astype(jnp.float32)                                # (T, U1, C)
    m3 = jnp.max(xf, axis=-1, keepdims=True)                              # (T, U1, 1)
    lse3 = jnp.log(jnp.sum(jnp.exp(xf - m3), axis=-1, keepdims=True))     # (T, U1, 1)
    denom = jnp.sum(m3 + lse3, axis=-1)                                   # (T, U1)

    # blank column: static lane slice (blank_idx is a Python int) + trivial reduce
    x_blank = jnp.sum(xf[:, :, blank_idx:blank_idx + 1], axis=-1)         # (T, U1)

    # target column: (U1, C) one-hot mask broadcast over time.
    # NOTE: rows u >= U_b read the zero-padded target label; those cells never
    # reach the readout (only u < U_b emits feed the picked cell), so the
    # result is unaffected — a future backward must not propagate through them.
    tgt = tgt_ref[0]                                                      # (U1, 1)
    onehot = lax.broadcasted_iota(jnp.int32, (U1, C), 1) == tgt           # (U1, C)
    x_tgt = jnp.sum(jnp.where(onehot[None, :, :], xf, 0.0), axis=-1)      # (T, U1)

    # ---- 2. DP lattices in (U1, T) layout: long axis (time) on lanes ----
    blank_lat = (x_blank - denom).T                                       # (U1, T)
    emit_lat = (x_tgt - denom).T                                          # (U1, T)

    u_iota = lax.broadcasted_iota(jnp.int32, (U1, T), 0)
    t_iota = lax.broadcasted_iota(jnp.int32, (U1, T), 1)
    t_is0 = t_iota == 0
    u_is0 = u_iota == 0
    is_00 = jnp.logical_and(t_is0, u_is0)

    # Hoisted shifted lattices (boundary row/col sanitized; those terms are
    # masked to _NEG in the DP anyway, sanitizing keeps pad garbage out).
    blank_up = jnp.where(t_is0, 0.0, pltpu.roll(blank_lat, 1, axis=1))    # blank[u, t-1]
    emit_left = jnp.where(u_is0, 0.0, pltpu.roll(emit_lat, 1, axis=0))    # emit[u-1, t]

    alpha_ref[...] = jnp.where(is_00, 0.0, _NEG)

    # ---- 3. wavefront DP with per-sequence dynamic trip count ----
    T_b = loglen_sref[b]
    U_b = tgtlen_sref[b]
    n_steps = T_b + U_b - 1        # cell (t, u) is final after t + u steps

    @pl.loop(0, n_steps)
    def _(_step):
        alpha = alpha_ref[...]
        a_up = jnp.where(t_is0, _NEG, pltpu.roll(alpha, 1, axis=1))       # alpha[u, t-1]
        a_left = jnp.where(u_is0, _NEG, pltpu.roll(alpha, 1, axis=0))     # alpha[u-1, t]
        x1 = a_up + blank_up
        x2 = a_left + emit_left
        mx = jnp.maximum(x1, x2)
        # logaddexp via max + log(1 + exp(-|a-b|)): 2 EUP ops instead of 3.
        cand = mx + jnp.log(1.0 + jnp.exp(-jnp.abs(x1 - x2)))
        alpha_ref[...] = jnp.where(is_00, 0.0, cand)

    # ---- 4. readout: cost = -(alpha[U_b, T_b-1] + blank[U_b, T_b-1]) ----
    alpha = alpha_ref[...]
    sel = jnp.logical_and(t_iota == T_b - 1, u_iota == U_b)
    picked = jnp.where(sel, alpha + blank_lat, 0.0)
    total = jnp.sum(jnp.sum(picked, axis=1, keepdims=True), axis=0, keepdims=True)
    cost_ref[0] = -total                                                  # (1, 1) store


def _check_inputs(logits, targets, logit_lengths, target_lengths, blank):
    if logits.ndim != 4:
        raise ValueError("logits must be 4D (batch, time, target+1, class)")
    if targets.ndim != 2:
        raise ValueError("targets must be 2D")
    if logit_lengths.ndim != 1 or target_lengths.ndim != 1:
        raise ValueError("logit_lengths / target_lengths must be 1D")
    B = logits.shape[0]
    if targets.shape[0] != B or logit_lengths.shape[0] != B or target_lengths.shape[0] != B:
        raise ValueError("batch dimension mismatch")
    if not (0 <= blank < logits.shape[-1]):
        raise ValueError("blank must be within [0, num_classes)")
    # TODO(synk): value checks against max(lengths) need a host sync; omitted.


def _phys_vmem_bytes():
    """Physical per-core VMEM; conservative 64 MiB fallback (fits all gens)."""
    try:
        return int(pltpu.get_tpu_info().vmem_capacity_bytes)
    except Exception:
        return 64 * 2**20


def rnnt_loss_pallas(logits, targets, logit_lengths, target_lengths,
                     blank=-1, fused_log_softmax=True, runtime_check=False):
    """Forward RNNT loss. Returns per-sequence costs of shape (batch,), float32."""
    B, T, U1, C = logits.shape
    if blank < 0:
        blank = C + blank
    if runtime_check:
        _check_inputs(logits, targets, logit_lengths, target_lengths, blank)

    # Keep HBM traffic at the input precision (bf16 supported); compute in f32
    # inside the kernel.  log_softmax is always fused in-kernel (idempotent for
    # pre-normalized inputs), so the fused_log_softmax=False path never pays an
    # extra XLA log_softmax HBM pass in the wrapper.
    del fused_log_softmax
    if not jnp.issubdtype(logits.dtype, jnp.floating):
        logits = logits.astype(jnp.float32)

    # Targets padded to width U1 (last column is never read by the DP) and
    # shaped (B, U1, 1) so the per-batch row lands on sublanes in VMEM.
    targets = targets.astype(jnp.int32)
    Umax = targets.shape[1]
    if Umax < U1:
        targets = jnp.pad(targets, ((0, 0), (0, U1 - Umax)))
    targets_r = targets[:, :U1].reshape(B, U1, 1)

    # Explicit, generation-aware VMEM budget:
    #   2x logits block (double-buffered) + ~3 transient f32 (T,U1,C) passes
    #   + a dozen (U1,T) DP lattices + headroom, capped below physical VMEM.
    _lane = lambda n: -(-n // 128) * 128
    _sub = lambda n: -(-n // 8) * 8
    lat3 = T * _sub(U1) * _lane(C)
    blk_bytes = lat3 * jnp.dtype(logits.dtype).itemsize
    dp_bytes = 12 * _sub(U1) * _lane(T) * 4
    need = 2 * blk_bytes + 3 * lat3 * 4 + dp_bytes + 2 * 2**20
    vmem_limit = int(min(max(need, 16 * 2**20), _phys_vmem_bytes() - 4 * 2**20))

    kernel = functools.partial(_rnnt_loss_kernel, blank)
    grid_spec = pltpu.PrefetchScalarGridSpec(
        num_scalar_prefetch=2,
        grid=(B,),   # batch elements independent; B>=2 keeps both v7x TCs busy
        in_specs=[pl.BlockSpec((1, U1, 1), lambda b, *_: (b, 0, 0)),
                  pl.BlockSpec((1, T, U1, C), lambda b, *_: (b, 0, 0, 0))],
        out_specs=pl.BlockSpec((1, 1, 1), lambda b, *_: (b, 0, 0)),
        scratch_shapes=[pltpu.VMEM((U1, T), jnp.float32)],
    )
    costs = pl.pallas_call(
        kernel,
        grid_spec=grid_spec,
        out_shape=jax.ShapeDtypeStruct((B, 1, 1), jnp.float32),
        compiler_params=pltpu.CompilerParams(
            dimension_semantics=("parallel",),
            vmem_limit_bytes=vmem_limit,
        ),
    )(logit_lengths.astype(jnp.int32), target_lengths.astype(jnp.int32),
      targets_r, logits)
    return costs.reshape(B)


class RNNTLossPallas:
    """Mirror of torchaudio.prototype.RNNTLoss (forward only)."""

    def __init__(self, blank=-1, clamp=-1, runtime_check=False,
                 fused_log_softmax=True, reuse_logits_for_grads=True):
        self.blank = blank
        self.clamp = clamp                      # backward-only; unused in forward
        self.runtime_check = runtime_check
        self.fused_log_softmax = fused_log_softmax
        self.reuse_logits_for_grads = reuse_logits_for_grads

    def __call__(self, logits, targets, logit_lengths, target_lengths):
        return rnnt_loss_pallas(logits, targets, logit_lengths, target_lengths,
                                blank=self.blank,
                                fused_log_softmax=self.fused_log_softmax,
                                runtime_check=self.runtime_check)


# -------------------- pure-numpy reference (for verification) --------------------
def rnnt_loss_ref(logits, targets, logit_lengths, target_lengths, blank=-1):
    logits = np.asarray(logits, np.float64)
    targets = np.asarray(targets)
    B, T, U1, C = logits.shape
    if blank < 0:
        blank = C + blank
    m = logits.max(-1, keepdims=True)
    logp = logits - (m + np.log(np.exp(logits - m).sum(-1, keepdims=True)))
    costs = np.zeros((B,), np.float64)
    for b in range(B):
        Tb, Ub = int(logit_lengths[b]), int(target_lengths[b])
        alpha = np.zeros((Tb, Ub + 1))
        for t in range(1, Tb):
            alpha[t, 0] = alpha[t - 1, 0] + logp[b, t - 1, 0, blank]
        for u in range(1, Ub + 1):
            alpha[0, u] = alpha[0, u - 1] + logp[b, 0, u - 1, targets[b, u - 1]]
        for t in range(1, Tb):
            for u in range(1, Ub + 1):
                a1 = alpha[t - 1, u] + logp[b, t - 1, u, blank]
                a2 = alpha[t, u - 1] + logp[b, t, u - 1, targets[b, u - 1]]
                alpha[t, u] = np.logaddexp(a1, a2)
        costs[b] = -(alpha[Tb - 1, Ub] + logp[b, Tb - 1, Ub, blank])
    return costs


if __name__ == "__main__":
    key = jax.random.PRNGKey(0)
    B, T, Umax, C = 2, 8, 5, 16          # batch, time, max target len, classes
    U1 = Umax + 1
    k1, k2 = jax.random.split(key)

    logits = jax.random.normal(k1, (B, T, U1, C), dtype=jnp.float32)
    targets = jax.random.randint(k2, (B, Umax), 0, C - 1, dtype=jnp.int32)
    logit_lengths = jnp.array([T, T - 2], dtype=jnp.int32)          # max == T
    target_lengths = jnp.array([Umax, Umax - 2], dtype=jnp.int32)   # max == Umax

    loss_mod = RNNTLossPallas()          # defaults: blank=-1, fused_log_softmax=True
    costs = loss_mod(logits, targets, logit_lengths, target_lengths)
    costs = jax.block_until_ready(costs)

    ref = rnnt_loss_ref(np.asarray(logits), np.asarray(targets),
                        np.asarray(logit_lengths), np.asarray(target_lengths),
                        blank=-1)
    assert costs.shape == (B,) and costs.dtype == jnp.float32
    np.testing.assert_allclose(np.asarray(costs), ref, rtol=1e-4, atol=1e-4)

    # exercise the non-fused path too (pre-normalized inputs; kernel is idempotent)
    pre_norm = jax.nn.log_softmax(logits, axis=-1)
    costs2 = RNNTLossPallas(fused_log_softmax=False)(
        pre_norm, targets, logit_lengths, target_lengths)
    costs2 = jax.block_until_ready(costs2)
    np.testing.assert_allclose(np.asarray(costs2), ref, rtol=1e-4, atol=1e-4)

    print("KERNEL_OK")
</pallas_src>

<mosaic_0001>
module attributes {stable_mosaic.version = 11 : i64} {
  func.func @_rnnt_loss_kernel(%arg0: i32, %arg1: memref<2xi32, #tpu.memory_space<smem>>, %arg2: memref<2xi32, #tpu.memory_space<smem>>, %arg3: memref<1x6x1xi32, #tpu.memory_space<vmem>>, %arg4: memref<1x8x6x16xf32, #tpu.memory_space<vmem>>, %arg5: memref<1x1x1xf32, #tpu.memory_space<vmem>>, %arg6: memref<6x8xf32, #tpu.memory_space<vmem>>) attributes {dimension_semantics = [#tpu.dimension_semantics<parallel>], iteration_bounds = array<i64: 2>, scalar_prefetch = 2 : i64, scratch_operands = 1 : i64, tpu.core_type = #tpu.core_type<tc>, window_params = [{transform_indices = @transform_0, window_bounds = array<i64: 1, 6, 1>}, {transform_indices = @transform_1, window_bounds = array<i64: 1, 8, 6, 16>}, {transform_indices = @transform_2, window_bounds = array<i64: 1, 1, 1>}]} {
    %c0 = arith.constant 0 : index
    %c0_0 = arith.constant 0 : index
    %c0_1 = arith.constant 0 : index
    %c0_2 = arith.constant 0 : index
    %0 = vector.load %arg4[%c0, %c0_0, %c0_1, %c0_2] : memref<1x8x6x16xf32, #tpu.memory_space<vmem>>, vector<1x8x6x16xf32>
    %1 = vector.shape_cast %0 : vector<1x8x6x16xf32> to vector<8x6x16xf32>
    %cst = arith.constant dense<0xFF800000> : vector<8x6xf32>
    %2 = vector.multi_reduction <maximumf>, %1, %cst [2] : vector<8x6x16xf32> to vector<8x6xf32>
    %3 = vector.shape_cast %2 : vector<8x6xf32> to vector<8x6x1xf32>
    %4 = vector.broadcast %3 : vector<8x6x1xf32> to vector<8x6x16xf32>
    %5 = arith.subf %1, %4 : vector<8x6x16xf32>
    %6 = math.exp %5 : vector<8x6x16xf32>
    %cst_3 = arith.constant dense<0.000000e+00> : vector<8x6xf32>
    %7 = vector.multi_reduction <add>, %6, %cst_3 [2] : vector<8x6x16xf32> to vector<8x6xf32>
    %8 = vector.shape_cast %7 : vector<8x6xf32> to vector<8x6x1xf32>
    %9 = math.log %8 : vector<8x6x1xf32>
    %10 = arith.addf %3, %9 : vector<8x6x1xf32>
    %cst_4 = arith.constant dense<0.000000e+00> : vector<8x6xf32>
    %11 = vector.multi_reduction <add>, %10, %cst_4 [2] : vector<8x6x1xf32> to vector<8x6xf32>
    %12 = vector.extract_strided_slice %1 {offsets = [0, 0, 15], sizes = [8, 6, 1], strides = [1, 1, 1]} : vector<8x6x16xf32> to vector<8x6x1xf32>
    %cst_5 = arith.constant dense<0.000000e+00> : vector<8x6xf32>
    %13 = vector.multi_reduction <add>, %12, %cst_5 [2] : vector<8x6x1xf32> to vector<8x6xf32>
    %c0_6 = arith.constant 0 : index
    %c0_7 = arith.constant 0 : index
    %c0_8 = arith.constant 0 : index
    %14 = vector.load %arg3[%c0_6, %c0_7, %c0_8] : memref<1x6x1xi32, #tpu.memory_space<vmem>>, vector<1x6x1xi32>
    %15 = vector.shape_cast %14 : vector<1x6x1xi32> to vector<6x1xi32>
    %16 = tpu.iota {dimensions = array<i32: 1>} : vector<6x16xi32>
    %17 = vector.broadcast %15 : vector<6x1xi32> to vector<6x16xi32>
    %18 = arith.cmpi eq, %16, %17 : vector<6x16xi32>
    %19 = vector.shape_cast %18 : vector<6x16xi1> to vector<1x6x16xi1>
    %cst_9 = arith.constant 0.000000e+00 : f32
    %20 = vector.shape_cast %19 : vector<1x6x16xi1> to vector<1x6x16xi1>
    %21 = vector.broadcast %20 : vector<1x6x16xi1> to vector<8x6x16xi1>
    %22 = vector.broadcast %cst_9 : f32 to vector<8x6x16xf32>
    %23 = arith.select %21, %1, %22 : vector<8x6x16xi1>, vector<8x6x16xf32>
    %cst_10 = arith.constant dense<0.000000e+00> : vector<8x6xf32>
    %24 = vector.multi_reduction <add>, %23, %cst_10 [2] : vector<8x6x16xf32> to vector<8x6xf32>
    %25 = arith.subf %13, %11 : vector<8x6xf32>
    %26 = tpu.transpose %25, [1, 0] : vector<8x6xf32> -> vector<6x8xf32>
    %27 = arith.subf %24, %11 : vector<8x6xf32>
    %28 = tpu.transpose %27, [1, 0] : vector<8x6xf32> -> vector<6x8xf32>
    %29 = tpu.iota {dimensions = array<i32: 0>} : vector<6x8xi32>
    %30 = tpu.iota {dimensions = array<i32: 1>} : vector<6x8xi32>
    %c0_i32 = arith.constant 0 : i32
    %31 = vector.broadcast %c0_i32 : i32 to vector<6x8xi32>
    %32 = arith.cmpi eq, %30, %31 : vector<6x8xi32>
    %c0_i32_11 = arith.constant 0 : i32
    %33 = vector.broadcast %c0_i32_11 : i32 to vector<6x8xi32>
    %34 = arith.cmpi eq, %29, %33 : vector<6x8xi32>
    %35 = arith.andi %32, %34 : vector<6x8xi1>
    %c1_i32 = arith.constant 1 : i32
    %36 = tpu.dynamic_rotate %26 by %c1_i32 dim 1 : vector<6x8xf32>, i32 -> vector<6x8xf32>
    %cst_12 = arith.constant 0.000000e+00 : f32
    %37 = vector.broadcast %cst_12 : f32 to vector<6x8xf32>
    %38 = arith.select %32, %37, %36 : vector<6x8xi1>, vector<6x8xf32>
    %c1_i32_13 = arith.constant 1 : i32
    %39 = tpu.dynamic_rotate %28 by %c1_i32_13 dim 0 : vector<6x8xf32>, i32 -> vector<6x8xf32>
    %cst_14 = arith.constant 0.000000e+00 : f32
    %40 = vector.broadcast %cst_14 : f32 to vector<6x8xf32>
    %41 = arith.select %34, %40, %39 : vector<6x8xi1>, vector<6x8xf32>
    %cst_15 = arith.constant 0.000000e+00 : f32
    %cst_16 = arith.constant -1.000000e+30 : f32
    %42 = vector.broadcast %cst_15 : f32 to vector<6x8xf32>
    %43 = vector.broadcast %cst_16 : f32 to vector<6x8xf32>
    %44 = arith.select %35, %42, %43 : vector<6x8xi1>, vector<6x8xf32>
    %c0_17 = arith.constant 0 : index
    %c0_18 = arith.constant 0 : index
    %45 = vector.load %arg6[%c0_17, %c0_18] : memref<6x8xf32, #tpu.memory_space<vmem>>, vector<6x8xf32>
    tpu.vector_store %arg6[%c0_17, %c0_18], %44 {strides = array<i32>} : memref<6x8xf32, #tpu.memory_space<vmem>>, vector<6x8xf32>,
    %46 = arith.index_cast %arg0 : i32 to index
    %47 = memref.load %arg1[%46] : memref<2xi32, #tpu.memory_space<smem>>
    %48 = arith.index_cast %arg0 : i32 to index
    %49 = memref.load %arg2[%48] : memref<2xi32, #tpu.memory_space<smem>>
    %50 = arith.addi %47, %49 : i32
    %c1_i32_19 = arith.constant 1 : i32
    %51 = arith.subi %50, %c1_i32_19 : i32
    %c0_i32_20 = arith.constant 0 : i32
    %52 = arith.subi %51, %c0_i32_20 : i32
    %c1_i32_21 = arith.constant 1 : i32
    %c1_i32_22 = arith.constant 1 : i32
    %53 = arith.subi %c1_i32_21, %c1_i32_22 : i32
    %54 = arith.addi %52, %53 : i32
    %c1_i32_23 = arith.constant 1 : i32
    %55 = arith.divsi %54, %c1_i32_23 : i32
    %c1_i32_24 = arith.constant 1 : i32
    %c0_i32_25 = arith.constant 0 : i32
    %c0_i32_26 = arith.constant 0 : i32
    %56 = arith.subi %55, %c0_i32_26 : i32
    %57 = arith.addi %c0_i32_26, %56 : i32
    %c1_i32_27 = arith.constant 1 : i32
    scf.for %arg7 = %c0_i32_26 to %57 step %c1_i32_27  : i32 {
      %77 = arith.muli %arg7, %c1_i32_24 : i32
      %78 = arith.addi %c0_i32_25, %77 : i32
      %c0_38 = arith.constant 0 : index
      %c0_39 = arith.constant 0 : index
      %79 = vector.load %arg6[%c0_38, %c0_39] : memref<6x8xf32, #tpu.memory_space<vmem>>, vector<6x8xf32>
      %c1_i32_40 = arith.constant 1 : i32
      %80 = tpu.dynamic_rotate %79 by %c1_i32_40 dim 1 : vector<6x8xf32>, i32 -> vector<6x8xf32>
      %cst_41 = arith.constant -1.000000e+30 : f32
      %81 = vector.broadcast %cst_41 : f32 to vector<6x8xf32>
      %82 = arith.select %32, %81, %80 : vector<6x8xi1>, vector<6x8xf32>
      %c1_i32_42 = arith.constant 1 : i32
      %83 = tpu.dynamic_rotate %79 by %c1_i32_42 dim 0 : vector<6x8xf32>, i32 -> vector<6x8xf32>
      %cst_43 = arith.constant -1.000000e+30 : f32
      %84 = vector.broadcast %cst_43 : f32 to vector<6x8xf32>
      %85 = arith.select %34, %84, %83 : vector<6x8xi1>, vector<6x8xf32>
      %86 = arith.addf %82, %38 : vector<6x8xf32>
      %87 = arith.addf %85, %41 : vector<6x8xf32>
      %88 = arith.maximumf %86, %87 : vector<6x8xf32>
      %89 = arith.subf %86, %87 : vector<6x8xf32>
      %90 = math.absf %89 : vector<6x8xf32>
      %cst_44 = arith.constant 0.000000e+00 : f32
      %91 = vector.broadcast %cst_44 : f32 to vector<6x8xf32>
      %92 = arith.subf %91, %90 : vector<6x8xf32>
      %93 = math.exp %92 : vector<6x8xf32>
      %cst_45 = arith.constant 1.000000e+00 : f32
      %94 = vector.broadcast %cst_45 : f32 to vector<6x8xf32>
      %95 = arith.addf %94, %93 : vector<6x8xf32>
      %96 = math.log %95 : vector<6x8xf32>
      %97 = arith.addf %88, %96 : vector<6x8xf32>
      %cst_46 = arith.constant 0.000000e+00 : f32
      %98 = vector.broadcast %cst_46 : f32 to vector<6x8xf32>
      %99 = arith.select %35, %98, %97 : vector<6x8xi1>, vector<6x8xf32>
      %c0_47 = arith.constant 0 : index
      %c0_48 = arith.constant 0 : index
      %100 = vector.load %arg6[%c0_47, %c0_48] : memref<6x8xf32, #tpu.memory_space<vmem>>, vector<6x8xf32>
      tpu.vector_store %arg6[%c0_47, %c0_48], %99 {strides = array<i32>} : memref<6x8xf32, #tpu.memory_space<vmem>>, vector<6x8xf32>,
    }
    %c0_28 = arith.constant 0 : index
    %c0_29 = arith.constant 0 : index
    %58 = vector.load %arg6[%c0_28, %c0_29] : memref<6x8xf32, #tpu.memory_space<vmem>>, vector<6x8xf32>
    %c1_i32_30 = arith.constant 1 : i32
    %59 = arith.subi %47, %c1_i32_30 : i32
    %60 = vector.broadcast %59 : i32 to vector<6x8xi32>
    %61 = arith.cmpi eq, %30, %60 : vector<6x8xi32>
    %62 = vector.broadcast %49 : i32 to vector<6x8xi32>
    %63 = arith.cmpi eq, %29, %62 : vector<6x8xi32>
    %64 = arith.andi %61, %63 : vector<6x8xi1>
    %65 = arith.addf %58, %26 : vector<6x8xf32>
    %cst_31 = arith.constant 0.000000e+00 : f32
    %66 = vector.broadcast %cst_31 : f32 to vector<6x8xf32>
    %67 = arith.select %64, %65, %66 : vector<6x8xi1>, vector<6x8xf32>
    %cst_32 = arith.constant dense<0.000000e+00> : vector<6xf32>
    %68 = vector.multi_reduction <add>, %67, %cst_32 [1] : vector<6x8xf32> to vector<6xf32>
    %69 = vector.shape_cast %68 : vector<6xf32> to vector<6x1xf32>
    %cst_33 = arith.constant dense<0.000000e+00> : vector<1xf32>
    %70 = vector.multi_reduction <add>, %69, %cst_33 [0] : vector<6x1xf32> to vector<1xf32>
    %71 = vector.shape_cast %70 : vector<1xf32> to vector<1x1xf32>
    %cst_34 = arith.constant 0.000000e+00 : f32
    %72 = vector.broadcast %cst_34 : f32 to vector<1x1xf32>
    %73 = arith.subf %72, %71 : vector<1x1xf32>
    %c0_35 = arith.constant 0 : index
    %c0_36 = arith.constant 0 : index
    %c0_37 = arith.constant 0 : index
    %74 = vector.load %arg5[%c0_35, %c0_36, %c0_37] : memref<1x1x1xf32, #tpu.memory_space<vmem>>, vector<1x1x1xf32>
    %75 = vector.shape_cast %74 : vector<1x1x1xf32> to vector<1x1xf32>
    %76 = vector.shape_cast %73 : vector<1x1xf32> to vector<1x1x1xf32>
    tpu.vector_store %arg5[%c0_35, %c0_36, %c0_37], %76 {strides = array<i32>} : memref<1x1x1xf32, #tpu.memory_space<vmem>>, vector<1x1x1xf32>,
    return
  }
  func.func @transform_0(%arg0: i32, %arg1: memref<2xi32, #tpu.memory_space<smem>>, %arg2: memref<2xi32, #tpu.memory_space<smem>>) -> (i32, i32, i32) {
    %c0_i32 = arith.constant 0 : i32
    %c0_i32_0 = arith.constant 0 : i32
    %c0_i32_1 = arith.constant 0 : i32
    return %arg0, %c0_i32, %c0_i32_0 : i32, i32, i32
  }
  func.func @transform_1(%arg0: i32, %arg1: memref<2xi32, #tpu.memory_space<smem>>, %arg2: memref<2xi32, #tpu.memory_space<smem>>) -> (i32, i32, i32, i32) {
    %c0_i32 = arith.constant 0 : i32
    %c0_i32_0 = arith.constant 0 : i32
    %c0_i32_1 = arith.constant 0 : i32
    %c0_i32_2 = arith.constant 0 : i32
    return %arg0, %c0_i32, %c0_i32_0, %c0_i32_1 : i32, i32, i32, i32
  }
  func.func @transform_2(%arg0: i32, %arg1: memref<2xi32, #tpu.memory_space<smem>>, %arg2: memref<2xi32, #tpu.memory_space<smem>>) -> (i32, i32, i32) {
    %c0_i32 = arith.constant 0 : i32
    %c0_i32_0 = arith.constant 0 : i32
    %c0_i32_1 = arith.constant 0 : i32
    return %arg0, %c0_i32, %c0_i32_0 : i32, i32, i32
  }
}

</mosaic_0001>

<llo_original>
// kernel: tpu_custom_call.1
$region0: #{tpu_custom_call.1}
  #allocation0 [shape = 'u32[]', space=smem, size = 0x4, offset = 0x4, fixed_abs, tag = 'smem constant byte address 0x4 - core index']
  #allocation1 [shape = 'u32[72,128]{1,0:T(1,128)}', space=vmem, size = 0x9000, scoped, tag = 'internal scratch']
  #allocation2 [shape = 'f32[6,8]{1,0:T(8,128)}', space=vmem, size = 0x1000, scoped, tag = 'scratch operand']
  #allocation3 [shape = 's32[1]{0}', space=sflag, size = 0x4, scoped, tag = 'scoped memory for tpu_custom_call.1']
  #allocation4 [shape = 'u8[512]{0}', space=smem, size = 0x200, scoped, tag = 'prefetched SMEM operand 0']
  #allocation5 [shape = 'u8[512]{0}', space=smem, size = 0x200, scoped, tag = 'prefetched SMEM operand 1']
  %s0 = inlined_call_operand.vmem [shape: s32[2], index: 0, kind: input, shape index: {}]
  %s1 = inlined_call_operand.vmem [shape: s32[2], index: 1, kind: input, shape index: {}]
  %s2 = inlined_call_operand.vmem [shape: s32[2,6,1], index: 2, kind: input, shape index: {}]
  %s3 = inlined_call_operand.vmem [shape: f32[2,8,6,16], index: 3, kind: input, shape index: {}]
  %s4 = inlined_call_operand.vmem [shape: f32[2,1,1], index: 4, kind: output, shape index: {}]
  %s5 = sld [smem:[#allocation0]]
  $region48: #{tpu_custom_call.1} parent=0
    _
  %s7 = ssub.s32 1, %s5
  %s8 = scalar_select 0, %s7, %s5
  %s10 = sshll.u32 %s0, 4
  %s11 = int_to_ptr.vmem [resolvable:$true] %s10
  %13 = dma.vmem_to_smem %s11, 16, [#allocation4], [#allocation3]
  %s15 = sshll.u32 %s1, 4
  %s16 = int_to_ptr.vmem [resolvable:$true] %s15
  %18 = dma.vmem_to_smem %s16, 16, [#allocation5], [#allocation3]
  %20 = dma.done [#allocation3], 32
  %21 = sfence
  loop: start=0, step=1, limit=4
  $region2: #{tpu_custom_call.1} parent=0 // loop_pre_header
    _
  $region3: #{tpu_custom_call.1} parent=0 // loop_header
    %s23 = sphi 0, %s27
    %p24 = scmp.ge.s32.totalorder %s23, 4
    %s33 = sphi 0, %s35
    %s36 = sphi 0, %s33
    %s37 = sphi 0, %s36
    %s53 = sphi 0, %s37
    %s59 = sphi 0, %s61
    %s62 = sphi 0, %s59
    %s63 = sphi 0, %s62
    %s79 = sphi 0, %s63
    %s85 = sphi 0, %s87
    %s88 = sphi 0, %s85
    %s89 = sphi 0, %s88
    %s105 = sphi 0, %s89
  $region4: #{tpu_custom_call.1} parent=0 // loop_header_branch
    %26 = sbr.rel (%p24) target = $region8
  $region5: #{tpu_custom_call.1} parent=0 // loop_body
    %s28 = ssub.s32 %s23, 1
    %s29 = ssub.s32 %s23, 2
    %s30 = sadd.s32 %s23, 1
    %s31 = ssub.s32 %s23, %s30
    %p32 = scmp.eq.s32.totalorder %s31, 0
    %s34 = sadd.s32 %s33, 1
    %s35 = scalar_select %p32, %s33, %s34
    %p38 = pneg %p32
    %p39 = scmp.eq.s32.totalorder %s23, 1
    %p40 = por %p38, %p39
    %p41 = scmp.ne.s32.totalorder %s33, %s36
    %p42 = scmp.eq.s32.totalorder %s23, 0
    %p43 = por %p41, %p42
    %p44 = scmp.ne.s32.totalorder %s33, %s36
    %p45 = scmp.eq.s32.totalorder %s28, 1
    %p46 = por %p44, %p45
    %p47 = scmp.ne.s32.totalorder %s36, %s37
    %p48 = scmp.eq.s32.totalorder %s28, 0
    %p49 = por %p47, %p48
    %p50 = scmp.ne.s32.totalorder %s36, %s37
    %p51 = scmp.eq.s32.totalorder %s29, 1
    %p52 = por %p50, %p51
    %p54 = scmp.ne.s32.totalorder %s37, %s53
    %p55 = scmp.eq.s32.totalorder %s29, 0
    %p56 = por %p54, %p55
    %s57 = ssub.s32 %s23, %s30
    %p58 = scmp.eq.s32.totalorder %s57, 0
    %s60 = sadd.s32 %s59, 1
    %s61 = scalar_select %p58, %s59, %s60
    %p64 = pneg %p58
    %p65 = scmp.eq.s32.totalorder %s23, 1
    %p66 = por %p64, %p65
    %p67 = scmp.ne.s32.totalorder %s59, %s62
    %p68 = scmp.eq.s32.totalorder %s23, 0
    %p69 = por %p67, %p68
    %p70 = scmp.ne.s32.totalorder %s59, %s62
    %p71 = scmp.eq.s32.totalorder %s28, 1
    %p72 = por %p70, %p71
    %p73 = scmp.ne.s32.totalorder %s62, %s63
    %p74 = scmp.eq.s32.totalorder %s28, 0
    %p75 = por %p73, %p74
    %p76 = scmp.ne.s32.totalorder %s62, %s63
    %p77 = scmp.eq.s32.totalorder %s29, 1
    %p78 = por %p76, %p77
    %p80 = scmp.ne.s32.totalorder %s63, %s79
    %p81 = scmp.eq.s32.totalorder %s29, 0
    %p82 = por %p80, %p81
    %s83 = ssub.s32 %s23, %s30
    %p84 = scmp.eq.s32.totalorder %s83, 0
    %s86 = sadd.s32 %s85, 1
    %s87 = scalar_select %p84, %s85, %s86
    %p90 = pneg %p84
    %p91 = scmp.eq.s32.totalorder %s23, 1
    %p92 = por %p90, %p91
    %p93 = scmp.ne.s32.totalorder %s85, %s88
    %p94 = scmp.eq.s32.totalorder %s23, 0
    %p95 = por %p93, %p94
    %p96 = scmp.ne.s32.totalorder %s85, %s88
    %p97 = scmp.eq.s32.totalorder %s28, 1
    %p98 = por %p96, %p97
    %p99 = scmp.ne.s32.totalorder %s88, %s89
    %p100 = scmp.eq.s32.totalorder %s28, 0
    %p101 = por %p99, %p100
    %p102 = scmp.ne.s32.totalorder %s88, %s89
    %p103 = scmp.eq.s32.totalorder %s29, 1
    %p104 = por %p102, %p103
    %p106 = scmp.ne.s32.totalorder %s89, %s105
    %p107 = scmp.eq.s32.totalorder %s29, 0
    %p108 = por %p106, %p107
    %p109 = scmp.le.s32.totalorder 1, %s23
    %p110 = scmp.lt.s32.totalorder %s23, 3
    %p111 = pnand %p109, %p110
    %p112 = pneg %p111
    // Predicated region
    $region9: #{tpu_custom_call.1} parent=5 // pred_check
      _
    $region10: #{tpu_custom_call.1} parent=5 // pred_check_branch
      %114 = sbr.rel (%p111) target = $region12
    $region11: #{tpu_custom_call.1} parent=5 // pred_region
      %s115 = ssub.s32 %s23, 1
    $region12: #{tpu_custom_call.1} parent=5 // pred_fallthru
      _
    %p116 = scmp.lt.s32.totalorder %s23, 2
    // Predicated region
    $region13: #{tpu_custom_call.1} parent=5 // pred_check
      %p117 = pneg %p116
    $region14: #{tpu_custom_call.1} parent=5 // pred_check_branch
      %119 = sbr.rel (%p117) target = $region16
    $region15: #{tpu_custom_call.1} parent=5 // pred_region
      // Predicated region
      $region17: #{tpu_custom_call.1} parent=15 // pred_check
        %p120 = pneg %p43
      $region18: #{tpu_custom_call.1} parent=15 // pred_check_branch
        %122 = sbr.rel (%p120) target = $region20
      $region19: #{tpu_custom_call.1} parent=15 // pred_region
        %p123 = scmp.lt.s32.totalorder %s23, 1
        %s124 = scalar_select %p123, %s23, 1
        %s125 = smul.addr %s124, 8
        %s126 = scalar_lea.vmem %s2, %s125
      $region20: #{tpu_custom_call.1} parent=15 // pred_fallthru
        _
      // Predicated region
      $region21: #{tpu_custom_call.1} parent=15 // pred_check
        %p127 = pneg %p69
      $region22: #{tpu_custom_call.1} parent=15 // pred_check_branch
        %129 = sbr.rel (%p127) target = $region24
      $region23: #{tpu_custom_call.1} parent=15 // pred_region
        %p130 = scmp.lt.s32.totalorder %s23, 1
        %s131 = scalar_select %p130, %s23, 1
        %s132 = smul.addr %s131, 8
        %s133 = smul.addr %s132, 8
        %s134 = scalar_lea.vmem %s3, %s133
      $region24: #{tpu_custom_call.1} parent=15 // pred_fallthru
        _
    $region16: #{tpu_custom_call.1} parent=5 // pred_fallthru
      _
    %p135 = scmp.le.s32.totalorder 1, %s23
    %p136 = scmp.lt.s32.totalorder %s23, 3
    %p137 = pnand %p135, %p136
    %p138 = pneg %p137
    // Predicated region
    $region25: #{tpu_custom_call.1} parent=5 // pred_check
      _
    $region26: #{tpu_custom_call.1} parent=5 // pred_check_branch
      %140 = sbr.rel (%p137) target = $region28
    $region27: #{tpu_custom_call.1} parent=5 // pred_region
      %s141 = ssub.s32 %s23, 1
      %p142 = scmp.lt.s32.totalorder %s28, 1
      %s143 = scalar_select %p142, %s28, 1
      %s144 = smul.addr %s143, 8
      %s145 = scalar_lea.vmem %s2, %s144
      %p146 = pneg %p49
      %p147 = pneg %p46
      %p148 = scmp.lt.s32.totalorder %s28, 1
      %s149 = scalar_select %p148, %s28, 1
      %s150 = smul.addr %s149, 8
      %s151 = smul.addr %s150, 8
      %s152 = scalar_lea.vmem %s3, %s151
      %p153 = pneg %p75
      %p154 = pneg %p72
      %p155 = pneg %p101
      %p156 = pneg %p98
      %p157 = scmp.lt.s32.totalorder %s28, 1
      %s158 = scalar_select %p157, %s28, 1
      %s159 = scalar_lea.vmem %s4, %s158
      %p160 = scmp.lt.s32.totalorder %s28, 1
      %s161 = scalar_select %p160, %s28, 1
      %s162 = smul.addr %s161, 8
      %s163 = scalar_lea.vmem %s2, %s162
      %p164 = scmp.lt.s32.totalorder %s28, 1
      %s165 = scalar_select %p164, %s28, 1
      %s166 = smul.addr %s165, 8
      %s167 = smul.addr %s166, 8
      %s168 = scalar_lea.vmem %s3, %s167
      %p169 = scmp.lt.s32.totalorder %s28, 1
      %s170 = scalar_select %p169, %s28, 1
      %s171 = scalar_lea.vmem %s4, %s170
      %v172 = vld [vmem:[%s168] sm:$0x3f]
      %v173 = vld [vmem:[%s168 + $0x8] sm:$0x3f]
      %v174 = vld [vmem:[%s168 + $0x10] sm:$0x3f]
      %v175 = vld [vmem:[%s168 + $0x18] sm:$0x3f]
      %v176 = vld [vmem:[%s168 + $0x20] sm:$0x3f]
      %v177 = vld [vmem:[%s168 + $0x28] sm:$0x3f]
      %v178 = vld [vmem:[%s168 + $0x30] sm:$0x3f]
      %v179 = vld [vmem:[%s168 + $0x38] sm:$0x3f]
      %vm180 = vcmask 128000
      %v181 = vsel %vm180, %v172, -inf
      %182 = vmax.xlane.f32.xlu0 %v181
      %v183 = vpop.xlane.xlu0 %182
      %v184 = vsel %vm180, %v173, -inf
      %185 = vmax.xlane.f32.xlu0 %v184
      %v186 = vpop.xlane.xlu0 %185
      %v187 = vsel %vm180, %v174, -inf
      %188 = vmax.xlane.f32.xlu0 %v187
      %v189 = vpop.xlane.xlu0 %188
      %v190 = vsel %vm180, %v175, -inf
      %191 = vmax.xlane.f32.xlu0 %v190
      %v192 = vpop.xlane.xlu0 %191
      %v193 = vsel %vm180, %v176, -inf
      %194 = vmax.xlane.f32.xlu0 %v193
      %v195 = vpop.xlane.xlu0 %194
      %v196 = vsel %vm180, %v177, -inf
      %197 = vmax.xlane.f32.xlu0 %v196
      %v198 = vpop.xlane.xlu0 %197
      %v199 = vsel %vm180, %v178, -inf
      %200 = vmax.xlane.f32.xlu0 %v199
      %v201 = vpop.xlane.xlu0 %200
      %v202 = vsel %vm180, %v179, -inf
      %203 = vmax.xlane.f32.xlu0 %v202
      %v204 = vpop.xlane.xlu0 %203
      %v205 = vsub.f32 %v172, %v183
      %v206 = vsub.f32 %v173, %v186
      %v207 = vsub.f32 %v174, %v189
      %v208 = vsub.f32 %v175, %v192
      %v209 = vsub.f32 %v176, %v195
      %v210 = vsub.f32 %v177, %v198
      %v211 = vsub.f32 %v178, %v201
      %v212 = vsub.f32 %v179, %v204
      %v213 = vmul.f32 %v205, 1.442695
      %v214 = vpow.pop %v213
      %v215 = vmul.f32 %v206, 1.442695
      %v216 = vpow.pop %v215
      %v217 = vmul.f32 %v207, 1.442695
      %v218 = vpow.pop %v217
      %v219 = vmul.f32 %v208, 1.442695
      %v220 = vpow.pop %v219
      %v221 = vmul.f32 %v209, 1.442695
      %v222 = vpow.pop %v221
      %v223 = vmul.f32 %v210, 1.442695
      %v224 = vpow.pop %v223
      %v225 = vmul.f32 %v211, 1.442695
      %v226 = vpow.pop %v225
      %v227 = vmul.f32 %v212, 1.442695
      %v228 = vpow.pop %v227
      %v229 = vsel %vm180, %v214, 0.0
      %230 = vadd.xlane.f32.xlu0 %v229
      %v231 = vpop.xlane.xlu0 %230
      %v232 = vsel %vm180, %v216, 0.0
      %233 = vadd.xlane.f32.xlu0 %v232
      %v234 = vpop.xlane.xlu0 %233
      %v235 = vsel %vm180, %v218, 0.0
      %236 = vadd.xlane.f32.xlu0 %v235
      %v237 = vpop.xlane.xlu0 %236
      %v238 = vsel %vm180, %v220, 0.0
      %239 = vadd.xlane.f32.xlu0 %v238
      %v240 = vpop.xlane.xlu0 %239
      %v241 = vsel %vm180, %v222, 0.0
      %242 = vadd.xlane.f32.xlu0 %v241
      %v243 = vpop.xlane.xlu0 %242
      %v244 = vsel %vm180, %v224, 0.0
      %245 = vadd.xlane.f32.xlu0 %v244
      %v246 = vpop.xlane.xlu0 %245
      %v247 = vsel %vm180, %v226, 0.0
      %248 = vadd.xlane.f32.xlu0 %v247
      %v249 = vpop.xlane.xlu0 %248
      %v250 = vsel %vm180, %v228, 0.0
      %251 = vadd.xlane.f32.xlu0 %v250
      %v252 = vpop.xlane.xlu0 %251
      %v253 = vlog2.pop %v231
      %v254 = vmul.f32 %v253, 0.6931472
      %v255 = vlog2.pop %v234
      %v256 = vmul.f32 %v255, 0.6931472
      %v257 = vlog2.pop %v237
      %v258 = vmul.f32 %v257, 0.6931472
      %v259 = vlog2.pop %v240
      %v260 = vmul.f32 %v259, 0.6931472
      %v261 = vlog2.pop %v243
      %v262 = vmul.f32 %v261, 0.6931472
      %v263 = vlog2.pop %v246
      %v264 = vmul.f32 %v263, 0.6931472
      %v265 = vlog2.pop %v249
      %v266 = vmul.f32 %v265, 0.6931472
      %v267 = vlog2.pop %v252
      %v268 = vmul.f32 %v267, 0.6931472
      %v269 = vadd.f32 %v183, %v254
      %v270 = vadd.f32 %v186, %v256
      %v271 = vadd.f32 %v189, %v258
      %v272 = vadd.f32 %v192, %v260
      %v273 = vadd.f32 %v195, %v262
      %v274 = vadd.f32 %v198, %v264
      %v275 = vadd.f32 %v201, %v266
      %v276 = vadd.f32 %v204, %v268
      %v277 = vadd.f32 %v269, 0.0
      %v278 = vadd.f32 %v270, 0.0
      %v279 = vadd.f32 %v271, 0.0
      %v280 = vadd.f32 %v272, 0.0
      %v281 = vadd.f32 %v273, 0.0
      %v282 = vadd.f32 %v274, 0.0
      %v283 = vadd.f32 %v275, 0.0
      %v284 = vadd.f32 %v276, 0.0
      %v285 = vadd.f32 %v172, 0.0
      %v286 = vadd.f32 %v173, 0.0
      %v287 = vadd.f32 %v174, 0.0
      %v288 = vadd.f32 %v175, 0.0
      %v289 = vadd.f32 %v176, 0.0
      %v290 = vadd.f32 %v177, 0.0
      %v291 = vadd.f32 %v178, 0.0
      %v292 = vadd.f32 %v179, 0.0
      %v293 = vld [vmem:[%s163] sm:$0x3f]
      %v294 = vlaneseq
      %v295 = vand.u32 %v294, 127
      %296 = vset.pattern.permute.xlu0 0
      %297 = vperm.xlu0 %296, %v293
      %v298 = vpop.permute.xlu0 %297
      %vm299 = vcmp.eq.s32.totalorder %v295, %v298
      %v300 = vsel %vm299, 1, 0
      %vm301 = vcmp.eq.s32.totalorder %v300, 1
      %v302 = vsel %vm301, %v172, 0.0
      %v303 = vsel %vm301, %v173, 0.0
      %v304 = vsel %vm301, %v174, 0.0
      %v305 = vsel %vm301, %v175, 0.0
      %v306 = vsel %vm301, %v176, 0.0
      %v307 = vsel %vm301, %v177, 0.0
      %v308 = vsel %vm301, %v178, 0.0
      %v309 = vsel %vm301, %v179, 0.0
      %v310 = vsel %vm180, %v302, 0.0
      %311 = vadd.xlane.f32.xlu0 %v310
      %v312 = vpop.xlane.xlu0 %311
      %v313 = vsel %vm180, %v303, 0.0
      %314 = vadd.xlane.f32.xlu0 %v313
      %v315 = vpop.xlane.xlu0 %314
      %v316 = vsel %vm180, %v304, 0.0
      %317 = vadd.xlane.f32.xlu0 %v316
      %v318 = vpop.xlane.xlu0 %317
      %v319 = vsel %vm180, %v305, 0.0
      %320 = vadd.xlane.f32.xlu0 %v319
      %v321 = vpop.xlane.xlu0 %320
      %v322 = vsel %vm180, %v306, 0.0
      %323 = vadd.xlane.f32.xlu0 %v322
      %v324 = vpop.xlane.xlu0 %323
      %v325 = vsel %vm180, %v307, 0.0
      %326 = vadd.xlane.f32.xlu0 %v325
      %v327 = vpop.xlane.xlu0 %326
      %v328 = vsel %vm180, %v308, 0.0
      %329 = vadd.xlane.f32.xlu0 %v328
      %v330 = vpop.xlane.xlu0 %329
      %v331 = vsel %vm180, %v309, 0.0
      %332 = vadd.xlane.f32.xlu0 %v331
      %v333 = vpop.xlane.xlu0 %332
      %v334 = vsub.f32 %v285, %v277
      %v335 = vsub.f32 %v286, %v278
      %v336 = vsub.f32 %v287, %v279
      %v337 = vsub.f32 %v288, %v280
      %v338 = vsub.f32 %v289, %v281
      %v339 = vsub.f32 %v290, %v282
      %v340 = vsub.f32 %v291, %v283
      %v341 = vsub.f32 %v292, %v284
      %350 = vset.pattern.permute.xlu0 15
      %351 = vperm.xlu0 %350, %v334
      %v352 = vpop.permute.xlu0 %351
      %353 = vset.pattern.permute.xlu0 15
      %354 = vperm.xlu0 %353, %v335
      %v355 = vpop.permute.xlu0 %354
      %356 = vset.pattern.permute.xlu0 15
      %357 = vperm.xlu0 %356, %v336
      %v358 = vpop.permute.xlu0 %357
      %359 = vset.pattern.permute.xlu0 15
      %360 = vperm.xlu0 %359, %v337
      %v361 = vpop.permute.xlu0 %360
      %362 = vset.pattern.permute.xlu0 15
      %363 = vperm.xlu0 %362, %v338
      %v364 = vpop.permute.xlu0 %363
      %365 = vset.pattern.permute.xlu0 15
      %366 = vperm.xlu0 %365, %v339
      %v367 = vpop.permute.xlu0 %366
      %368 = vset.pattern.permute.xlu0 15
      %369 = vperm.xlu0 %368, %v340
      %v370 = vpop.permute.xlu0 %369
      %371 = vset.pattern.permute.xlu0 15
      %372 = vperm.xlu0 %371, %v341
      %v373 = vpop.permute.xlu0 %372
      %v374 = vperm.slane %v352, %v295
      %v375 = vperm.slane %v355, %v295
      %v376 = vperm.slane %v358, %v295
      %v377 = vperm.slane %v361, %v295
      %v378 = vperm.slane %v364, %v295
      %v379 = vperm.slane %v367, %v295
      %v380 = vperm.slane %v370, %v295
      %v381 = vperm.slane %v373, %v295
      %vm382 = vcmask 1041409
      %v383 = vsel %vm382, %v375, %v374
      %vm384 = vcmask 1042434
      %v385 = vsel %vm384, %v376, %v383
      %vm386 = vcmask 1043459
      %v387 = vsel %vm386, %v377, %v385
      %vm388 = vcmask 1044484
      %v389 = vsel %vm388, %v378, %v387
      %vm390 = vcmask 1045509
      %v391 = vsel %vm390, %v379, %v389
      %vm392 = vcmask 1046534
      %v393 = vsel %vm392, %v380, %v391
      %vm394 = vcmask 1047559
      %v395 = vsel %vm394, %v381, %v393
      %397 = vxpose.xlu0.b32.start [1/16] %v395, 128
      %398 = vxpose.xlu0.b32.cont [2/16] 0.0, 128
      %399 = vxpose.xlu0.b32.cont [3/16] 0.0, 128
      %400 = vxpose.xlu0.b32.cont [4/16] 0.0, 128
      %401 = vxpose.xlu0.b32.cont [5/16] 0.0, 128
      %402 = vxpose.xlu0.b32.cont [6/16] 0.0, 128
      %403 = vxpose.xlu0.b32.cont [7/16] 0.0, 128
      %404 = vxpose.xlu0.b32.cont [8/16] 0.0, 128
      %405 = vxpose.xlu0.b32.cont [9/16] 0.0, 128
      %406 = vxpose.xlu0.b32.cont [10/16] 0.0, 128
      %407 = vxpose.xlu0.b32.cont [11/16] 0.0, 128
      %408 = vxpose.xlu0.b32.cont [12/16] 0.0, 128
      %409 = vxpose.xlu0.b32.cont [13/16] 0.0, 128
      %410 = vxpose.xlu0.b32.cont [14/16] 0.0, 128
      %411 = vxpose.xlu0.b32.cont [15/16] 0.0, 128
      %412 = vxpose.xlu0.b32.end [16/16] 0.0, 128
      %v413 = vpop.trf.xlu0
      %v414 = vpop.trf.xlu0
      %v415 = vpop.trf.xlu0
      %v416 = vpop.trf.xlu0
      %v417 = vpop.trf.xlu0
      %v418 = vpop.trf.xlu0
      %v419 = vpop.trf.xlu0
      %v420 = vpop.trf.xlu0
      %v421 = vpop.trf.xlu0
      %v422 = vpop.trf.xlu0
      %v423 = vpop.trf.xlu0
      %v424 = vpop.trf.xlu0
      %v425 = vpop.trf.xlu0
      %v426 = vpop.trf.xlu0
      %v427 = vpop.trf.xlu0
      %v428 = vpop.trf.xlu0
      %v429 = vsub.f32 %v312, %v277
      %v430 = vsub.f32 %v315, %v278
      %v431 = vsub.f32 %v318, %v279
      %v432 = vsub.f32 %v321, %v280
      %v433 = vsub.f32 %v324, %v281
      %v434 = vsub.f32 %v327, %v282
      %v435 = vsub.f32 %v330, %v283
      %v436 = vsub.f32 %v333, %v284
      %v445 = vperm.slane %v429, %v295
      %v446 = vperm.slane %v430, %v295
      %v447 = vperm.slane %v431, %v295
      %v448 = vperm.slane %v432, %v295
      %v449 = vperm.slane %v433, %v295
      %v450 = vperm.slane %v434, %v295
      %v451 = vperm.slane %v435, %v295
      %v452 = vperm.slane %v436, %v295
      %v453 = vsel %vm382, %v446, %v445
      %v454 = vsel %vm384, %v447, %v453
      %v455 = vsel %vm386, %v448, %v454
      %v456 = vsel %vm388, %v449, %v455
      %v457 = vsel %vm390, %v450, %v456
      %v458 = vsel %vm392, %v451, %v457
      %v459 = vsel %vm394, %v452, %v458
      %461 = vxpose.xlu0.b32.start [1/16] %v459, 128
      %462 = vxpose.xlu0.b32.cont [2/16] 0.0, 128
      %463 = vxpose.xlu0.b32.cont [3/16] 0.0, 128
      %464 = vxpose.xlu0.b32.cont [4/16] 0.0, 128
      %465 = vxpose.xlu0.b32.cont [5/16] 0.0, 128
      %466 = vxpose.xlu0.b32.cont [6/16] 0.0, 128
      %467 = vxpose.xlu0.b32.cont [7/16] 0.0, 128
      %468 = vxpose.xlu0.b32.cont [8/16] 0.0, 128
      %469 = vxpose.xlu0.b32.cont [9/16] 0.0, 128
      %470 = vxpose.xlu0.b32.cont [10/16] 0.0, 128
      %471 = vxpose.xlu0.b32.cont [11/16] 0.0, 128
      %472 = vxpose.xlu0.b32.cont [12/16] 0.0, 128
      %473 = vxpose.xlu0.b32.cont [13/16] 0.0, 128
      %474 = vxpose.xlu0.b32.cont [14/16] 0.0, 128
      %475 = vxpose.xlu0.b32.cont [15/16] 0.0, 128
      %476 = vxpose.xlu0.b32.end [16/16] 0.0, 128
      %v477 = vpop.trf.xlu0
      %v478 = vpop.trf.xlu0
      %v479 = vpop.trf.xlu0
      %v480 = vpop.trf.xlu0
      %v481 = vpop.trf.xlu0
      %v482 = vpop.trf.xlu0
      %v483 = vpop.trf.xlu0
      %v484 = vpop.trf.xlu0
      %v485 = vpop.trf.xlu0
      %v486 = vpop.trf.xlu0
      %v487 = vpop.trf.xlu0
      %v488 = vpop.trf.xlu0
      %v489 = vpop.trf.xlu0
      %v490 = vpop.trf.xlu0
      %v491 = vpop.trf.xlu0
      %v492 = vpop.trf.xlu0
      %v493 = vlaneseq
      %v494 = vshrl.u32 %v493, 7
      %vm495 = vcmp.eq.s32.totalorder %v295, 0
      %vm496 = vcmp.eq.s32.totalorder %v494, 0
      %vm497 = vmand %vm495, %vm496
      %vm498 = vcmask 1047616
      %499 = vrot.lane.b32.xlu0 %v413, 8
      %v500 = vpop.permute.xlu0 %499
      %v501 = vsel %vm498, %v500, %v413
      %502 = vrot.lane.b32.xlu0 %v501, 8
      %v503 = vpop.permute.xlu0 %502
      %v504 = vsel %vm498, %v503, %v413
      %506 = vrot.lane.b32.xlu0 %v504, 121
      %v507 = vpop.permute.xlu0 %506
      %v509 = vsel %vm495, 0.0, %v507
      %vm510 = vcmask 1047558
      %v511 = vrot.slane %v477, 2
      %v512 = vsel %vm510, %v511, %v477
      %v513 = vrot.slane %v512, 2
      %v514 = vsel %vm510, %v513, %v477
      %vm517 = vcmask 1042432
      %v518 = vrot.slane %v514, 5
      %v519 = vrot.slane %v513, 5
      %v520 = vsel %vm517, %v518, %v519
      %v522 = vsel %vm496, 0.0, %v520
      %v523 = vsel %vm497, 0.0, -1e+30
      %vm524 = vcmask 62464
      %525 = vst.msk [vmem:[#allocation2] sm:$0x3f] %vm524, %v523
      %s526 = sld [smem:[#allocation4 + %s28]]
      %s527 = sld [smem:[#allocation5 + %s28]]
      %s528 = sadd.s32 %s526, %s527
      %s529 = ssub.s32 %s528, 1
      // While loop
      $region29: #{tpu_custom_call.1} parent=27 // loop_pre_header
        _
      $region30: #{tpu_custom_call.1} parent=27 // loop_header
        %s531 = sphi 0, %s533
        %p532 = scmp.ge.s32.totalorder %s531, %s529
      $region31: #{tpu_custom_call.1} parent=27 // loop_header_branch
        %535 = sbr.rel (%p532) target = $region35
      $region32: #{tpu_custom_call.1} parent=27 // loop_body
        %v536 = vld [vmem:[#allocation2] sm:$0x3f]
        %537 = vrot.lane.b32.xlu0 %v536, 8
        %v538 = vpop.permute.xlu0 %537
        %v539 = vsel %vm498, %v538, %v536
        %540 = vrot.lane.b32.xlu0 %v539, 8
        %v541 = vpop.permute.xlu0 %540
        %v542 = vsel %vm498, %v541, %v536
        %544 = vrot.lane.b32.xlu0 %v542, 121
        %v545 = vpop.permute.xlu0 %544
        %v547 = vsel %vm495, -1e+30, %v545
        %v548 = vrot.slane %v536, 2
        %v549 = vsel %vm510, %v548, %v536
        %v550 = vrot.slane %v549, 2
        %v551 = vsel %vm510, %v550, %v536
        %v554 = vrot.slane %v551, 5
        %v555 = vrot.slane %v550, 5
        %v556 = vsel %vm517, %v554, %v555
        %v558 = vsel %vm496, -1e+30, %v556
        %v559 = vadd.f32 %v547, %v509
        %v560 = vadd.f32 %v558, %v522
        %v561 = vmax.f32 %v559, %v560
        %v562 = vsub.f32 %v559, %v560
        %v563 = vand.u32 2147483647, %v562
        %v564 = vsub.f32 0.0, %v563
        %v565 = vmul.f32 %v564, 1.442695
        %v566 = vpow.pop %v565
        %v567 = vadd.f32 %v566, 1.0
        %v568 = vlog2.pop %v567
        %v569 = vmul.f32 %v568, 0.6931472
        %v570 = vadd.f32 %v561, %v569
        %v571 = vsel %vm497, 0.0, %v570
        %572 = vst.msk [vmem:[#allocation2] sm:$0x3f] %vm524, %v571
      $region33: #{tpu_custom_call.1} parent=27 // loop_footer
        %s533 = sadd.s32 %s531, 1
      $region34: #{tpu_custom_call.1} parent=27 // loop_footer_branch
        %530 = sbr.rel target = $region30
      $region35: #{tpu_custom_call.1} parent=27 // loop_exit
        _
      %v573 = vld [vmem:[#allocation2] sm:$0x3f]
      %s574 = ssub.s32 %s526, 1
      %v575 = vstv %s574
      %vm576 = vcmp.eq.s32.totalorder %v295, %v575
      %v577 = vstv %s527
      %vm578 = vcmp.eq.s32.totalorder %v494, %v577
      %vm579 = vmand %vm576, %vm578
      %v580 = vadd.f32 %v573, %v413
      %v581 = vsel %vm579, %v580, 0.0
      %v582 = vsel %vm524, %v581, 0.0
      %583 = vadd.xlane.f32.xlu0 %v582
      %v584 = vpop.xlane.xlu0 %583
      %vm585 = vcmask 1045504
      %v586 = vsel %vm585, %v584, 0.0
      %v587 = vrot.slane %v586, 4
      %v588 = vadd.f32 %v586, %v587
      %v589 = vrot.slane %v588, 2
      %v590 = vadd.f32 %v588, %v589
      %v591 = vrot.slane %v590, 1
      %v592 = vadd.f32 %v590, %v591
      %v593 = vsub.f32 0.0, %v592
      %vm594 = vcmask 0
      %595 = vst.msk [vmem:[%s171] sm:$0x1] %vm594, %v593
      %p596 = scmp.lt.s32.totalorder %s28, 1
      %s597 = scalar_select %p596, %s28, 1
      %s598 = scalar_lea.vmem %s4, %s597
      // Predicated region
      $region36: #{tpu_custom_call.1} parent=27 // pred_check
        %p599 = pneg %p98
      $region37: #{tpu_custom_call.1} parent=27 // pred_check_branch
        %601 = sbr.rel (%p599) target = $region39
      $region38: #{tpu_custom_call.1} parent=27 // pred_region
        _
      $region39: #{tpu_custom_call.1} parent=27 // pred_fallthru
        _
    $region28: #{tpu_custom_call.1} parent=5 // pred_fallthru
      _
    %p602 = scmp.le.s32.totalorder 2, %s23
    // Predicated region
    $region40: #{tpu_custom_call.1} parent=5 // pred_check
      %p603 = pneg %p602
    $region41: #{tpu_custom_call.1} parent=5 // pred_check_branch
      %605 = sbr.rel (%p603) target = $region43
    $region42: #{tpu_custom_call.1} parent=5 // pred_region
      %s606 = ssub.s32 %s23, 2
      // Predicated region
      $region44: #{tpu_custom_call.1} parent=42 // pred_check
        %p607 = pneg %p104
      $region45: #{tpu_custom_call.1} parent=42 // pred_check_branch
        %609 = sbr.rel (%p607) target = $region47
      $region46: #{tpu_custom_call.1} parent=42 // pred_region
        %p610 = scmp.lt.s32.totalorder %s29, 1
        %s611 = scalar_select %p610, %s29, 1
        %s612 = scalar_lea.vmem %s4, %s611
      $region47: #{tpu_custom_call.1} parent=42 // pred_fallthru
        _
    $region43: #{tpu_custom_call.1} parent=5 // pred_fallthru
      _
  $region6: #{tpu_custom_call.1} parent=0 // loop_footer
    %s27 = sadd.s32 1, %s23
  $region7: #{tpu_custom_call.1} parent=0 // loop_footer_branch
    %22 = sbr.rel target = $region3
  $region8: #{tpu_custom_call.1} parent=0 // loop_exit
    _

</llo_original>
